<compile_context>
chip_gen: v5e
topology: v5e:2x2
jax: 0.10.0
libtpu: 0.0.40
codegen_flags: <defaults>
</compile_context>

<pallas_src>
import jax
import jax.numpy as jnp
from jax.experimental import pallas as pl
from jax.experimental.pallas import tpu as pltpu

EPS = 1e-5                      # nn.BatchNorm2d default eps
LANE = 128                      # lane width / MXU column quantum


def _round_up(x, m):
    return (x + m - 1) // m * m


def _pick_vmem_limit():
    """32 MiB scoped budget on 64-MiB-VMEM chips (v7x), 64 MiB on 128-MiB chips."""
    try:
        cap = pltpu.get_tpu_info().vmem_capacity_bytes
    except Exception:
        return 32 * 1024 * 1024
    return int(min(max(cap // 2, 32 * 1024 * 1024), 96 * 1024 * 1024))


VMEM_LIMIT = _pick_vmem_limit()
DEFAULT_TILE_M = 1024 if VMEM_LIMIT >= 64 * 1024 * 1024 else 512


# ----------------------------- Pallas kernels ------------------------------ #
def _gemm_stats_kernel(p_ref, w_ref, y_ref, stats_ref):
    """One M-tile of the conv GEMM + per-tile per-channel sum / sum-of-squares.

    Conv bias is intentionally omitted: bias followed by training-mode BN
    cancels exactly.  Stats are taken from the f32 MXU accumulator *before*
    the (possibly bf16) store of y, so the BN fold is unaffected by the cast.
    """
    y = jnp.dot(p_ref[...], w_ref[...], preferred_element_type=jnp.float32)
    stats_ref[0, 0:1, :] = jnp.sum(y, axis=0, keepdims=True)         # sum
    stats_ref[0, 1:2, :] = jnp.sum(y * y, axis=0, keepdims=True)     # sum sq
    y_ref[...] = y.astype(y_ref.dtype)


def _bn_relu_kernel(y_ref, scale_ref, shift_ref, out_ref):
    """out = relu(y * scale + shift)  (folded training-mode BatchNorm), f32 math."""
    y = y_ref[...].astype(jnp.float32)
    out_ref[...] = jnp.maximum(y * scale_ref[...] + shift_ref[...],
                               0.0).astype(out_ref.dtype)


def _bn_relu_add_relu_kernel(y_ref, scale_ref, shift_ref,
                             sc_ref, sc_scale_ref, sc_shift_ref, out_ref):
    """Fused tail: relu(bn2(conv2)) + bn_s(shortcut), then final ReLU (f32 math)."""
    h = jnp.maximum(
        y_ref[...].astype(jnp.float32) * scale_ref[...] + shift_ref[...], 0.0)
    sc = sc_ref[...].astype(jnp.float32) * sc_scale_ref[...] + sc_shift_ref[...]
    w = sc.shape[-1]
    if w == h.shape[-1]:
        out_ref[...] = jnp.maximum(h + sc, 0.0).astype(out_ref.dtype)
    else:
        # Identity shortcut arrives unpadded (width cout < cp).  The padded h
        # columns are already >= 0 and get sliced away by the caller, so store
        # them as-is and overwrite the live lanes with the residual add+ReLU.
        out_ref[...] = h.astype(out_ref.dtype)
        out_ref[:, :w] = jnp.maximum(h[:, :w] + sc, 0.0).astype(out_ref.dtype)


# ------------------------------ glue (JAX) --------------------------------- #
def _mosaic_params():
    return pltpu.CompilerParams(dimension_semantics=("parallel",),
                                vmem_limit_bytes=VMEM_LIMIT)


def _im2col(x_nhwc, k, stride, pad, dtype):
    """k x k patches -> (N*Ho*Wo, round_up(k*k*C, LANE)) in `dtype`.

    The cast to the MXU compute dtype and the K zero-padding are fused into
    the single concat materialization (no separate pad / cast pass over HBM).
    Note: for very small k*k*C the trailing zero lanes still cost HBM reads in
    the GEMM; kept lane-aligned on purpose for robust MXU lowering.
    """
    N, H, W, C = x_nhwc.shape
    xp = jnp.pad(x_nhwc.astype(dtype), ((0, 0), (pad, pad), (pad, pad), (0, 0)))
    Ho = (H + 2 * pad - k) // stride + 1
    Wo = (W + 2 * pad - k) // stride + 1
    cols = []
    for kh in range(k):
        for kw in range(k):
            cols.append(xp[:, kh:kh + (Ho - 1) * stride + 1:stride,
                            kw:kw + (Wo - 1) * stride + 1:stride, :])
    kt = k * k * C
    kp = _round_up(kt, LANE)
    if kp > kt:
        cols.append(jnp.zeros((N, Ho, Wo, kp - kt), dtype))
    patches = jnp.concatenate(cols, axis=-1)                 # [N,Ho,Wo,kp]
    return patches.reshape(N * Ho * Wo, kp), (Ho, Wo)


def _w_to_2d(w_oihw):
    """PyTorch (Cout, Cin, kh, kw) -> (kh*kw*Cin, Cout), matching _im2col."""
    cout = w_oihw.shape[0]
    return jnp.transpose(w_oihw, (2, 3, 1, 0)).reshape(-1, cout)


def _conv_gemm_bn_stats(lhs, w2d, gamma, beta, tm, cp, m_true, compute_dtype):
    """Tiled conv GEMM with cross-tile BatchNorm statistics.

    `lhs` is (m_pad, kp) already in compute dtype (K-padded rows are zero, row
    padding is zero).  Returns the pre-BN conv output y (m_pad, cp) stored in
    compute dtype and the folded per-channel (scale, shift), each (1, cp) f32.
    """
    m_pad, kp = lhs.shape
    k_true, cout = w2d.shape
    w = jnp.pad(w2d.astype(compute_dtype),
                ((0, kp - k_true), (0, cp - cout)))           # tiny
    nt = m_pad // tm
    itm = jnp.dtype(compute_dtype).itemsize

    y, stats = pl.pallas_call(
        _gemm_stats_kernel,
        grid=(nt,),
        in_specs=[pl.BlockSpec((tm, kp), lambda i: (i, 0)),
                  pl.BlockSpec((kp, cp), lambda i: (0, 0))],
        out_specs=[pl.BlockSpec((tm, cp), lambda i: (i, 0)),
                   pl.BlockSpec((1, 2, cp), lambda i: (i, 0, 0))],
        out_shape=[jax.ShapeDtypeStruct((m_pad, cp), compute_dtype),
                   jax.ShapeDtypeStruct((nt, 2, cp), jnp.float32)],
        compiler_params=_mosaic_params(),
        cost_estimate=pl.CostEstimate(
            flops=2 * m_pad * kp * cp, transcendentals=0,
            bytes_accessed=(m_pad * kp + kp * cp + m_pad * cp) * itm
                           + nt * 2 * cp * 4),
    )(lhs, w)

    # Tiny per-channel reduction + BN fold (f32) in plain JAX.
    # NOTE: E[y^2]-E[y]^2 is cancellation-prone when |mean| >> std; fine at
    # init-scale weights (clamped at 0), switch to a shifted two-pass fold if
    # reused with arbitrary pretrained weights.
    total = jnp.sum(stats, axis=0)                        # (2, cp)
    mean = total[0] / m_true                              # pad rows are zero
    var = jnp.maximum(total[1] / m_true - mean * mean, 0.0)
    g = jnp.pad(gamma.astype(jnp.float32), (0, cp - cout))
    b = jnp.pad(beta.astype(jnp.float32), (0, cp - cout))
    scale = g * jax.lax.rsqrt(var + EPS)
    shift = b - mean * scale
    return y, scale[None, :], shift[None, :]


def _bn_relu(y, scale, shift, tm):
    m_pad, cp = y.shape
    nt = m_pad // tm
    return pl.pallas_call(
        _bn_relu_kernel,
        grid=(nt,),
        in_specs=[pl.BlockSpec((tm, cp), lambda i: (i, 0)),
                  pl.BlockSpec((1, cp), lambda i: (0, 0)),
                  pl.BlockSpec((1, cp), lambda i: (0, 0))],
        out_specs=pl.BlockSpec((tm, cp), lambda i: (i, 0)),
        out_shape=jax.ShapeDtypeStruct((m_pad, cp), y.dtype),
        input_output_aliases={0: 0},          # h1 overwrites y1 in place
        compiler_params=_mosaic_params(),
        cost_estimate=pl.CostEstimate(
            flops=2 * m_pad * cp, transcendentals=0,
            bytes_accessed=2 * m_pad * cp * y.dtype.itemsize),
    )(y, scale, shift)


def _bn_relu_add_relu(y, scale, shift, sc, sc_scale, sc_shift, tm):
    m_pad, cp = y.shape
    sc_w = sc.shape[1]
    nt = m_pad // tm
    return pl.pallas_call(
        _bn_relu_add_relu_kernel,
        grid=(nt,),
        in_specs=[pl.BlockSpec((tm, cp), lambda i: (i, 0)),
                  pl.BlockSpec((1, cp), lambda i: (0, 0)),
                  pl.BlockSpec((1, cp), lambda i: (0, 0)),
                  pl.BlockSpec((tm, sc_w), lambda i: (i, 0)),
                  pl.BlockSpec((1, sc_w), lambda i: (0, 0)),
                  pl.BlockSpec((1, sc_w), lambda i: (0, 0))],
        out_specs=pl.BlockSpec((tm, cp), lambda i: (i, 0)),
        out_shape=jax.ShapeDtypeStruct((m_pad, cp), y.dtype),
        input_output_aliases={0: 0},          # result overwrites y2 in place
        compiler_params=_mosaic_params(),
        cost_estimate=pl.CostEstimate(
            flops=5 * m_pad * cp, transcendentals=0,
            bytes_accessed=2 * m_pad * cp * y.dtype.itemsize
                           + m_pad * sc_w * sc.dtype.itemsize),
    )(y, scale, shift, sc, sc_scale, sc_shift)


def res_block_forward(x_nchw, params, downsample, *,
                      tile_m=DEFAULT_TILE_M, compute_dtype=jnp.bfloat16):
    x = jnp.transpose(x_nchw, (0, 2, 3, 1)).astype(jnp.float32)   # NHWC, f32
    N, H, W, cin = x.shape
    cout = params["w1"].shape[0]
    cp = _round_up(cout, LANE)                 # lane-dense output channels
    stride1 = 2 if downsample else 1

    # conv1 / conv2 / shortcut all share the same output spatial dims -> one M.
    p1, (Ho, Wo) = _im2col(x, 3, stride1, 1, compute_dtype)       # [M, kp1]
    m = N * Ho * Wo

    # M tiling: large lane-dense tiles, but always >= 2 tiles so both v7x
    # TensorCores get work from the 1-D "parallel" grid.
    tm = max(8, min(_round_up(tile_m, 8), _round_up(m, 8)))
    if tm >= m and m >= 16:
        tm = _round_up(m // 2, 8)
    m_pad = _round_up(m, tm)

    def pad_rows(a):
        if a.shape[0] == m_pad:
            return a
        return jnp.pad(a, ((0, m_pad - a.shape[0]), (0, 0)))

    # ---- conv1 (cross-tile BN stats) then bn1+relu applied in place --------
    y1, s1, t1 = _conv_gemm_bn_stats(pad_rows(p1), _w_to_2d(params["w1"]),
                                     params["g1"], params["be1"],
                                     tm, cp, m, compute_dtype)
    h1 = _bn_relu(y1, s1, t1, tm)                       # (m_pad, cp), compute dtype
    h1 = h1[:m, :cout].reshape(N, Ho, Wo, cout)

    # ---- shortcut branch (BN applied inside the fused tail kernel) ---------
    if downsample:
        xs = x[:, ::2, ::2, :].astype(compute_dtype).reshape(m, cin)  # 1x1, s2
        xs = jnp.pad(xs, ((0, m_pad - m), (0, _round_up(cin, LANE) - cin)))
        ysc, ssc, tsc = _conv_gemm_bn_stats(xs, _w_to_2d(params["ws"]),
                                            params["gs"], params["bes"],
                                            tm, cp, m, compute_dtype)
    else:
        # identity shortcut: fed unpadded (no (M, cp) zero+set copy); the tail
        # kernel widens it in-kernel.  scale=1, shift=0.
        assert cin == cout, "identity shortcut requires in_channels == out_channels"
        ysc = pad_rows(x.reshape(m, cin))               # f32, width cin
        ssc = jnp.ones((1, cin), jnp.float32)
        tsc = jnp.zeros((1, cin), jnp.float32)

    # ---- conv2 + bn2 + relu + residual add + final relu (fused tail) -------
    p2, _ = _im2col(h1, 3, 1, 1, compute_dtype)         # h1 already compute dtype
    y2, s2, t2 = _conv_gemm_bn_stats(pad_rows(p2), _w_to_2d(params["w2"]),
                                     params["g2"], params["be2"],
                                     tm, cp, m, compute_dtype)
    out = _bn_relu_add_relu(y2, s2, t2, ysc, ssc, tsc, tm)

    out = out[:m, :cout].astype(jnp.float32).reshape(N, Ho, Wo, cout)
    return jnp.transpose(out, (0, 3, 1, 2))             # back to NCHW


# --------------------------- pure-JAX reference ----------------------------- #
def _ref_conv(x, w, b, stride, pad):
    y = jax.lax.conv_general_dilated(
        x, w, (stride, stride), ((pad, pad), (pad, pad)),
        dimension_numbers=("NCHW", "OIHW", "NCHW"))
    return y + b[None, :, None, None]


def _ref_bn(y, gamma, beta):
    mean = y.mean(axis=(0, 2, 3), keepdims=True)
    var = ((y - mean) ** 2).mean(axis=(0, 2, 3), keepdims=True)
    return ((y - mean) * jax.lax.rsqrt(var + EPS)
            * gamma[None, :, None, None] + beta[None, :, None, None])


def res_block_ref(x, p, downsample):
    stride1 = 2 if downsample else 1
    if downsample:
        sc = _ref_bn(_ref_conv(x, p["ws"], p["bs"], 2, 0), p["gs"], p["bes"])
    else:
        sc = x
    h = jax.nn.relu(_ref_bn(_ref_conv(x, p["w1"], p["b1"], stride1, 1),
                            p["g1"], p["be1"]))
    h = jax.nn.relu(_ref_bn(_ref_conv(h, p["w2"], p["b2"], 1, 1),
                            p["g2"], p["be2"]))
    return jax.nn.relu(h + sc)


# ------------------------------ param init --------------------------------- #
def init_params(key, cin, cout, downsample):
    ks = jax.random.split(key, 6)
    p = {
        "w1": 0.1 * jax.random.normal(ks[0], (cout, cin, 3, 3), jnp.float32),
        "b1": 0.1 * jax.random.normal(ks[1], (cout,), jnp.float32),
        "w2": 0.1 * jax.random.normal(ks[2], (cout, cout, 3, 3), jnp.float32),
        "b2": 0.1 * jax.random.normal(ks[3], (cout,), jnp.float32),
        "g1": jnp.ones((cout,), jnp.float32), "be1": jnp.zeros((cout,), jnp.float32),
        "g2": jnp.ones((cout,), jnp.float32), "be2": jnp.zeros((cout,), jnp.float32),
    }
    if downsample:
        p["ws"] = 0.1 * jax.random.normal(ks[4], (cout, cin, 1, 1), jnp.float32)
        p["bs"] = 0.1 * jax.random.normal(ks[5], (cout,), jnp.float32)
        p["gs"] = jnp.ones((cout,), jnp.float32)
        p["bes"] = jnp.zeros((cout,), jnp.float32)
    return p


if __name__ == "__main__":
    key = jax.random.PRNGKey(0)
    kx, kp1, kp2 = jax.random.split(key, 3)
    x = jax.random.normal(kx, (2, 4, 16, 16), jnp.float32)   # NCHW like PyTorch

    fwd = jax.jit(res_block_forward,
                  static_argnames=("downsample", "tile_m", "compute_dtype"))

    cases = [
        # (downsample, params, expected output shape)
        (True, init_params(kp1, 4, 8, True), (2, 8, 8, 8)),
        (False, init_params(kp2, 4, 4, False), (2, 4, 16, 16)),
    ]
    for downsample, p, shape in cases:
        ref = res_block_ref(x, p, downsample)
        assert ref.shape == shape

        # production path: bf16 MXU operands + bf16 pre-BN activations,
        # f32 BN/ReLU epilogue (tile_m=128 exercises the multi-tile stats path)
        out_bf16 = fwd(x, p, downsample=downsample, tile_m=128,
                       compute_dtype=jnp.bfloat16)
        jax.block_until_ready(out_bf16)
        assert out_bf16.shape == shape
        assert jnp.allclose(out_bf16, ref, atol=5e-2, rtol=5e-2), \
            float(jnp.max(jnp.abs(out_bf16 - ref)))

        # f32 path: tight agreement with the f32 reference
        out_f32 = fwd(x, p, downsample=downsample, tile_m=128,
                      compute_dtype=jnp.float32)
        jax.block_until_ready(out_f32)
        assert jnp.allclose(out_f32, ref, atol=1e-4, rtol=1e-4), \
            float(jnp.max(jnp.abs(out_f32 - ref)))

    # TODO(synk): BatchNorm running_mean/running_var buffer updates are a
    # training side effect and do not affect the forward output; not emitted.
    print("KERNEL_OK")
</pallas_src>

<mosaic_0001>
module attributes {stable_mosaic.version = 11 : i64} {
  func.func @_gemm_stats_kernel(%arg0: i32, %arg1: memref<64x128xbf16, #tpu.memory_space<vmem>>, %arg2: memref<128x128xbf16, #tpu.memory_space<vmem>>, %arg3: memref<64x128xbf16, #tpu.memory_space<vmem>>, %arg4: memref<1x2x128xf32, #tpu.memory_space<vmem>>) attributes {dimension_semantics = [#tpu.dimension_semantics<parallel>], iteration_bounds = array<i64: 2>, scalar_prefetch = 0 : i64, scratch_operands = 0 : i64, tpu.core_type = #tpu.core_type<tc>, window_params = [{transform_indices = @transform_0, window_bounds = array<i64: 64, 128>}, {pipeline_mode = #tpu.pipeline_mode<synchronous>, transform_indices = @transform_1, window_bounds = array<i64: 128, 128>}, {transform_indices = @transform_2, window_bounds = array<i64: 64, 128>}, {transform_indices = @transform_3, window_bounds = array<i64: 1, 2, 128>}]} {
    %c0 = arith.constant 0 : index
    %c0_0 = arith.constant 0 : index
    %0 = vector.load %arg1[%c0, %c0_0] : memref<64x128xbf16, #tpu.memory_space<vmem>>, vector<64x128xbf16>
    %c0_1 = arith.constant 0 : index
    %c0_2 = arith.constant 0 : index
    %1 = vector.load %arg2[%c0_1, %c0_2] : memref<128x128xbf16, #tpu.memory_space<vmem>>, vector<128x128xbf16>
    %cst = arith.constant dense<0.000000e+00> : vector<64x128xf32>
    %2 = tpu.matmul %0, %1, %cst {dimension_numbers = #tpu.dot_dimension_numbers<[1], [0], [0], [1], [0, 0, 1, 1], [], []>} : vector<64x128xbf16>, vector<128x128xbf16>, vector<64x128xf32> -> vector<64x128xf32>
    %cst_3 = arith.constant dense<0.000000e+00> : vector<128xf32>
    %3 = vector.multi_reduction <add>, %2, %cst_3 [0] : vector<64x128xf32> to vector<128xf32>
    %4 = vector.shape_cast %3 : vector<128xf32> to vector<1x128xf32>
    %c0_4 = arith.constant 0 : index
    %c0_5 = arith.constant 0 : index
    %c0_6 = arith.constant 0 : index
    %5 = vector.load %arg4[%c0_4, %c0_5, %c0_6] : memref<1x2x128xf32, #tpu.memory_space<vmem>>, vector<1x1x128xf32>
    %6 = vector.shape_cast %5 : vector<1x1x128xf32> to vector<1x128xf32>
    %7 = vector.shape_cast %4 : vector<1x128xf32> to vector<1x1x128xf32>
    tpu.vector_store %arg4[%c0_4, %c0_5, %c0_6], %7 {strides = array<i32>} : memref<1x2x128xf32, #tpu.memory_space<vmem>>, vector<1x1x128xf32>,
    %8 = arith.mulf %2, %2 : vector<64x128xf32>
    %cst_7 = arith.constant dense<0.000000e+00> : vector<128xf32>
    %9 = vector.multi_reduction <add>, %8, %cst_7 [0] : vector<64x128xf32> to vector<128xf32>
    %10 = vector.shape_cast %9 : vector<128xf32> to vector<1x128xf32>
    %c0_8 = arith.constant 0 : index
    %c1 = arith.constant 1 : index
    %c0_9 = arith.constant 0 : index
    %11 = vector.load %arg4[%c0_8, %c1, %c0_9] : memref<1x2x128xf32, #tpu.memory_space<vmem>>, vector<1x1x128xf32>
    %12 = vector.shape_cast %11 : vector<1x1x128xf32> to vector<1x128xf32>
    %13 = vector.shape_cast %10 : vector<1x128xf32> to vector<1x1x128xf32>
    tpu.vector_store %arg4[%c0_8, %c1, %c0_9], %13 {strides = array<i32>} : memref<1x2x128xf32, #tpu.memory_space<vmem>>, vector<1x1x128xf32>,
    %14 = arith.truncf %2 : vector<64x128xf32> to vector<64x128xbf16>
    %c0_10 = arith.constant 0 : index
    %c0_11 = arith.constant 0 : index
    %15 = vector.load %arg3[%c0_10, %c0_11] : memref<64x128xbf16, #tpu.memory_space<vmem>>, vector<64x128xbf16>
    tpu.vector_store %arg3[%c0_10, %c0_11], %14 {strides = array<i32>} : memref<64x128xbf16, #tpu.memory_space<vmem>>, vector<64x128xbf16>,
    return
  }
  func.func @transform_0(%arg0: i32) -> (i32, i32) {
    %c0_i32 = arith.constant 0 : i32
    %c0_i32_0 = arith.constant 0 : i32
    return %arg0, %c0_i32 : i32, i32
  }
  func.func @transform_1(%arg0: i32) -> (i32, i32) {
    %c0_i32 = arith.constant 0 : i32
    %c0_i32_0 = arith.constant 0 : i32
    %c0_i32_1 = arith.constant 0 : i32
    return %c0_i32, %c0_i32_0 : i32, i32
  }
  func.func @transform_2(%arg0: i32) -> (i32, i32) {
    %c0_i32 = arith.constant 0 : i32
    %c0_i32_0 = arith.constant 0 : i32
    return %arg0, %c0_i32 : i32, i32
  }
  func.func @transform_3(%arg0: i32) -> (i32, i32, i32) {
    %c0_i32 = arith.constant 0 : i32
    %c0_i32_0 = arith.constant 0 : i32
    %c0_i32_1 = arith.constant 0 : i32
    return %arg0, %c0_i32, %c0_i32_0 : i32, i32, i32
  }
}

module attributes {stable_mosaic.version = 11 : i64} {
  func.func @_bn_relu_kernel(%arg0: i32, %arg1: memref<64x128xbf16, #tpu.memory_space<vmem>>, %arg2: memref<1x128xf32, #tpu.memory_space<vmem>>, %arg3: memref<1x128xf32, #tpu.memory_space<vmem>>, %arg4: memref<64x128xbf16, #tpu.memory_space<vmem>>) attributes {dimension_semantics = [#tpu.dimension_semantics<parallel>], iteration_bounds = array<i64: 2>, scalar_prefetch = 0 : i64, scratch_operands = 0 : i64, tpu.core_type = #tpu.core_type<tc>, window_params = [{transform_indices = @transform_0, window_bounds = array<i64: 64, 128>}, {pipeline_mode = #tpu.pipeline_mode<synchronous>, transform_indices = @transform_1, window_bounds = array<i64: 1, 128>}, {pipeline_mode = #tpu.pipeline_mode<synchronous>, transform_indices = @transform_2, window_bounds = array<i64: 1, 128>}, {transform_indices = @transform_3, window_bounds = array<i64: 64, 128>}]} {
    %c0 = arith.constant 0 : index
    %c0_0 = arith.constant 0 : index
    %0 = vector.load %arg1[%c0, %c0_0] : memref<64x128xbf16, #tpu.memory_space<vmem>>, vector<64x128xbf16>
    %1 = arith.extf %0 : vector<64x128xbf16> to vector<64x128xf32>
    %c0_1 = arith.constant 0 : index
    %c0_2 = arith.constant 0 : index
    %2 = vector.load %arg2[%c0_1, %c0_2] : memref<1x128xf32, #tpu.memory_space<vmem>>, vector<1x128xf32>
    %3 = vector.broadcast %2 : vector<1x128xf32> to vector<64x128xf32>
    %4 = arith.mulf %1, %3 : vector<64x128xf32>
    %c0_3 = arith.constant 0 : index
    %c0_4 = arith.constant 0 : index
    %5 = vector.load %arg3[%c0_3, %c0_4] : memref<1x128xf32, #tpu.memory_space<vmem>>, vector<1x128xf32>
    %6 = vector.broadcast %5 : vector<1x128xf32> to vector<64x128xf32>
    %7 = arith.addf %4, %6 : vector<64x128xf32>
    %cst = arith.constant 0.000000e+00 : f32
    %8 = vector.broadcast %cst : f32 to vector<64x128xf32>
    %9 = arith.maximumf %7, %8 : vector<64x128xf32>
    %10 = arith.truncf %9 : vector<64x128xf32> to vector<64x128xbf16>
    %c0_5 = arith.constant 0 : index
    %c0_6 = arith.constant 0 : index
    %11 = vector.load %arg4[%c0_5, %c0_6] : memref<64x128xbf16, #tpu.memory_space<vmem>>, vector<64x128xbf16>
    tpu.vector_store %arg4[%c0_5, %c0_6], %10 {strides = array<i32>} : memref<64x128xbf16, #tpu.memory_space<vmem>>, vector<64x128xbf16>,
    return
  }
  func.func @transform_0(%arg0: i32) -> (i32, i32) {
    %c0_i32 = arith.constant 0 : i32
    %c0_i32_0 = arith.constant 0 : i32
    return %arg0, %c0_i32 : i32, i32
  }
  func.func @transform_1(%arg0: i32) -> (i32, i32) {
    %c0_i32 = arith.constant 0 : i32
    %c0_i32_0 = arith.constant 0 : i32
    %c0_i32_1 = arith.constant 0 : i32
    return %c0_i32, %c0_i32_0 : i32, i32
  }
  func.func @transform_2(%arg0: i32) -> (i32, i32) {
    %c0_i32 = arith.constant 0 : i32
    %c0_i32_0 = arith.constant 0 : i32
    %c0_i32_1 = arith.constant 0 : i32
    return %c0_i32, %c0_i32_0 : i32, i32
  }
  func.func @transform_3(%arg0: i32) -> (i32, i32) {
    %c0_i32 = arith.constant 0 : i32
    %c0_i32_0 = arith.constant 0 : i32
    return %arg0, %c0_i32 : i32, i32
  }
}

module attributes {stable_mosaic.version = 11 : i64} {
  func.func @_bn_relu_add_relu_kernel(%arg0: i32, %arg1: memref<64x128xbf16, #tpu.memory_space<vmem>>, %arg2: memref<1x128xf32, #tpu.memory_space<vmem>>, %arg3: memref<1x128xf32, #tpu.memory_space<vmem>>, %arg4: memref<64x128xbf16, #tpu.memory_space<vmem>>, %arg5: memref<1x128xf32, #tpu.memory_space<vmem>>, %arg6: memref<1x128xf32, #tpu.memory_space<vmem>>, %arg7: memref<64x128xbf16, #tpu.memory_space<vmem>>) attributes {dimension_semantics = [#tpu.dimension_semantics<parallel>], iteration_bounds = array<i64: 2>, scalar_prefetch = 0 : i64, scratch_operands = 0 : i64, tpu.core_type = #tpu.core_type<tc>, window_params = [{transform_indices = @transform_0, window_bounds = array<i64: 64, 128>}, {pipeline_mode = #tpu.pipeline_mode<synchronous>, transform_indices = @transform_1, window_bounds = array<i64: 1, 128>}, {pipeline_mode = #tpu.pipeline_mode<synchronous>, transform_indices = @transform_2, window_bounds = array<i64: 1, 128>}, {transform_indices = @transform_3, window_bounds = array<i64: 64, 128>}, {pipeline_mode = #tpu.pipeline_mode<synchronous>, transform_indices = @transform_4, window_bounds = array<i64: 1, 128>}, {pipeline_mode = #tpu.pipeline_mode<synchronous>, transform_indices = @transform_5, window_bounds = array<i64: 1, 128>}, {transform_indices = @transform_6, window_bounds = array<i64: 64, 128>}]} {
    %c0 = arith.constant 0 : index
    %c0_0 = arith.constant 0 : index
    %0 = vector.load %arg1[%c0, %c0_0] : memref<64x128xbf16, #tpu.memory_space<vmem>>, vector<64x128xbf16>
    %1 = arith.extf %0 : vector<64x128xbf16> to vector<64x128xf32>
    %c0_1 = arith.constant 0 : index
    %c0_2 = arith.constant 0 : index
    %2 = vector.load %arg2[%c0_1, %c0_2] : memref<1x128xf32, #tpu.memory_space<vmem>>, vector<1x128xf32>
    %3 = vector.broadcast %2 : vector<1x128xf32> to vector<64x128xf32>
    %4 = arith.mulf %1, %3 : vector<64x128xf32>
    %c0_3 = arith.constant 0 : index
    %c0_4 = arith.constant 0 : index
    %5 = vector.load %arg3[%c0_3, %c0_4] : memref<1x128xf32, #tpu.memory_space<vmem>>, vector<1x128xf32>
    %6 = vector.broadcast %5 : vector<1x128xf32> to vector<64x128xf32>
    %7 = arith.addf %4, %6 : vector<64x128xf32>
    %cst = arith.constant 0.000000e+00 : f32
    %8 = vector.broadcast %cst : f32 to vector<64x128xf32>
    %9 = arith.maximumf %7, %8 : vector<64x128xf32>
    %c0_5 = arith.constant 0 : index
    %c0_6 = arith.constant 0 : index
    %10 = vector.load %arg4[%c0_5, %c0_6] : memref<64x128xbf16, #tpu.memory_space<vmem>>, vector<64x128xbf16>
    %11 = arith.extf %10 : vector<64x128xbf16> to vector<64x128xf32>
    %c0_7 = arith.constant 0 : index
    %c0_8 = arith.constant 0 : index
    %12 = vector.load %arg5[%c0_7, %c0_8] : memref<1x128xf32, #tpu.memory_space<vmem>>, vector<1x128xf32>
    %13 = vector.broadcast %12 : vector<1x128xf32> to vector<64x128xf32>
    %14 = arith.mulf %11, %13 : vector<64x128xf32>
    %c0_9 = arith.constant 0 : index
    %c0_10 = arith.constant 0 : index
    %15 = vector.load %arg6[%c0_9, %c0_10] : memref<1x128xf32, #tpu.memory_space<vmem>>, vector<1x128xf32>
    %16 = vector.broadcast %15 : vector<1x128xf32> to vector<64x128xf32>
    %17 = arith.addf %14, %16 : vector<64x128xf32>
    %18 = arith.addf %9, %17 : vector<64x128xf32>
    %cst_11 = arith.constant 0.000000e+00 : f32
    %19 = vector.broadcast %cst_11 : f32 to vector<64x128xf32>
    %20 = arith.maximumf %18, %19 : vector<64x128xf32>
    %21 = arith.truncf %20 : vector<64x128xf32> to vector<64x128xbf16>
    %c0_12 = arith.constant 0 : index
    %c0_13 = arith.constant 0 : index
    %22 = vector.load %arg7[%c0_12, %c0_13] : memref<64x128xbf16, #tpu.memory_space<vmem>>, vector<64x128xbf16>
    tpu.vector_store %arg7[%c0_12, %c0_13], %21 {strides = array<i32>} : memref<64x128xbf16, #tpu.memory_space<vmem>>, vector<64x128xbf16>,
    return
  }
  func.func @transform_0(%arg0: i32) -> (i32, i32) {
    %c0_i32 = arith.constant 0 : i32
    %c0_i32_0 = arith.constant 0 : i32
    return %arg0, %c0_i32 : i32, i32
  }
  func.func @transform_1(%arg0: i32) -> (i32, i32) {
    %c0_i32 = arith.constant 0 : i32
    %c0_i32_0 = arith.constant 0 : i32
    %c0_i32_1 = arith.constant 0 : i32
    return %c0_i32, %c0_i32_0 : i32, i32
  }
  func.func @transform_2(%arg0: i32) -> (i32, i32) {
    %c0_i32 = arith.constant 0 : i32
    %c0_i32_0 = arith.constant 0 : i32
    %c0_i32_1 = arith.constant 0 : i32
    return %c0_i32, %c0_i32_0 : i32, i32
  }
  func.func @transform_3(%arg0: i32) -> (i32, i32) {
    %c0_i32 = arith.constant 0 : i32
    %c0_i32_0 = arith.constant 0 : i32
    return %arg0, %c0_i32 : i32, i32
  }
  func.func @transform_4(%arg0: i32) -> (i32, i32) {
    %c0_i32 = arith.constant 0 : i32
    %c0_i32_0 = arith.constant 0 : i32
    %c0_i32_1 = arith.constant 0 : i32
    return %c0_i32, %c0_i32_0 : i32, i32
  }
  func.func @transform_5(%arg0: i32) -> (i32, i32) {
    %c0_i32 = arith.constant 0 : i32
    %c0_i32_0 = arith.constant 0 : i32
    %c0_i32_1 = arith.constant 0 : i32
    return %c0_i32, %c0_i32_0 : i32, i32
  }
  func.func @transform_6(%arg0: i32) -> (i32, i32) {
    %c0_i32 = arith.constant 0 : i32
    %c0_i32_0 = arith.constant 0 : i32
    return %arg0, %c0_i32 : i32, i32
  }
}

</mosaic_0001>

<llo_original>
// kernel: res_block_forward.6
$region0: #{res_block_forward.6}
  #allocation0 [shape = 'u32[]', space=smem, size = 0x4, offset = 0x4, fixed_abs, tag = 'smem constant byte address 0x4 - core index']
  #allocation1 [shape = 'u32[72,128]{1,0:T(1,128)}', space=vmem, size = 0x9000, scoped, tag = 'internal scratch']
  %s0 = inlined_call_operand.vmem [shape: bf16[128,128], index: 0, kind: input, shape index: {}, may-alias: {0,3}]
  %s1 = inlined_call_operand.vmem [shape: f32[1,128], index: 1, kind: input, shape index: {}]
  %s2 = inlined_call_operand.vmem [shape: f32[1,128], index: 2, kind: input, shape index: {}]
  %s3 = inlined_call_operand.vmem [shape: bf16[128,128], index: 3, kind: output, shape index: {}, may-alias: {0,3}]
  %s4 = sld [smem:[#allocation0]]
  $region45: #{res_block_forward.6} parent=0
    _
  %s6 = ssub.s32 1, %s4
  %s7 = scalar_select 0, %s6, %s4
  loop: start=0, step=1, limit=4
  $region2: #{res_block_forward.6} parent=0 // loop_pre_header
    _
  $region3: #{res_block_forward.6} parent=0 // loop_header
    %s9 = sphi 0, %s13
    %p10 = scmp.ge.s32.totalorder %s9, 4
    %s19 = sphi 0, %s21
    %s22 = sphi 0, %s19
    %s23 = sphi 0, %s22
    %s39 = sphi 0, %s23
    %s43 = sphi 0, %s43
    %s45 = sphi 0, %s43
    %s46 = sphi 0, %s45
    %s60 = sphi 0, %s46
    %s64 = sphi 0, %s64
    %s66 = sphi 0, %s64
    %s67 = sphi 0, %s66
    %s81 = sphi 0, %s67
    %s87 = sphi 0, %s89
    %s90 = sphi 0, %s87
    %s91 = sphi 0, %s90
    %s107 = sphi 0, %s91
  $region4: #{res_block_forward.6} parent=0 // loop_header_branch
    %12 = sbr.rel (%p10) target = $region8
  $region5: #{res_block_forward.6} parent=0 // loop_body
    %s14 = ssub.s32 %s9, 1
    %s15 = ssub.s32 %s9, 2
    %s16 = sadd.s32 %s9, 1
    %s17 = ssub.s32 %s9, %s16
    %p18 = scmp.eq.s32.totalorder %s17, 0
    %s20 = sadd.s32 %s19, 1
    %s21 = scalar_select %p18, %s19, %s20
    %p24 = pneg %p18
    %p25 = scmp.eq.s32.totalorder %s9, 1
    %p26 = por %p24, %p25
    %p27 = scmp.ne.s32.totalorder %s19, %s22
    %p28 = scmp.eq.s32.totalorder %s9, 0
    %p29 = por %p27, %p28
    %p30 = scmp.ne.s32.totalorder %s19, %s22
    %p31 = scmp.eq.s32.totalorder %s14, 1
    %p32 = por %p30, %p31
    %p33 = scmp.ne.s32.totalorder %s22, %s23
    %p34 = scmp.eq.s32.totalorder %s14, 0
    %p35 = por %p33, %p34
    %p36 = scmp.ne.s32.totalorder %s22, %s23
    %p37 = scmp.eq.s32.totalorder %s15, 1
    %p38 = por %p36, %p37
    %p40 = scmp.ne.s32.totalorder %s23, %s39
    %p41 = scmp.eq.s32.totalorder %s15, 0
    %p42 = por %p40, %p41
    %s44 = sadd.s32 %s43, 1
    %p47 = scmp.eq.s32.totalorder %s9, 1
    %p48 = scmp.ne.s32.totalorder %s43, %s45
    %p49 = scmp.eq.s32.totalorder %s9, 0
    %p50 = por %p48, %p49
    %p51 = scmp.ne.s32.totalorder %s43, %s45
    %p52 = scmp.eq.s32.totalorder %s14, 1
    %p53 = por %p51, %p52
    %p54 = scmp.ne.s32.totalorder %s45, %s46
    %p55 = scmp.eq.s32.totalorder %s14, 0
    %p56 = por %p54, %p55
    %p57 = scmp.ne.s32.totalorder %s45, %s46
    %p58 = scmp.eq.s32.totalorder %s15, 1
    %p59 = por %p57, %p58
    %p61 = scmp.ne.s32.totalorder %s46, %s60
    %p62 = scmp.eq.s32.totalorder %s15, 0
    %p63 = por %p61, %p62
    %s65 = sadd.s32 %s64, 1
    %p68 = scmp.eq.s32.totalorder %s9, 1
    %p69 = scmp.ne.s32.totalorder %s64, %s66
    %p70 = scmp.eq.s32.totalorder %s9, 0
    %p71 = por %p69, %p70
    %p72 = scmp.ne.s32.totalorder %s64, %s66
    %p73 = scmp.eq.s32.totalorder %s14, 1
    %p74 = por %p72, %p73
    %p75 = scmp.ne.s32.totalorder %s66, %s67
    %p76 = scmp.eq.s32.totalorder %s14, 0
    %p77 = por %p75, %p76
    %p78 = scmp.ne.s32.totalorder %s66, %s67
    %p79 = scmp.eq.s32.totalorder %s15, 1
    %p80 = por %p78, %p79
    %p82 = scmp.ne.s32.totalorder %s67, %s81
    %p83 = scmp.eq.s32.totalorder %s15, 0
    %p84 = por %p82, %p83
    %s85 = ssub.s32 %s9, %s16
    %p86 = scmp.eq.s32.totalorder %s85, 0
    %s88 = sadd.s32 %s87, 1
    %s89 = scalar_select %p86, %s87, %s88
    %p92 = pneg %p86
    %p93 = scmp.eq.s32.totalorder %s9, 1
    %p94 = por %p92, %p93
    %p95 = scmp.ne.s32.totalorder %s87, %s90
    %p96 = scmp.eq.s32.totalorder %s9, 0
    %p97 = por %p95, %p96
    %p98 = scmp.ne.s32.totalorder %s87, %s90
    %p99 = scmp.eq.s32.totalorder %s14, 1
    %p100 = por %p98, %p99
    %p101 = scmp.ne.s32.totalorder %s90, %s91
    %p102 = scmp.eq.s32.totalorder %s14, 0
    %p103 = por %p101, %p102
    %p104 = scmp.ne.s32.totalorder %s90, %s91
    %p105 = scmp.eq.s32.totalorder %s15, 1
    %p106 = por %p104, %p105
    %p108 = scmp.ne.s32.totalorder %s91, %s107
    %p109 = scmp.eq.s32.totalorder %s15, 0
    %p110 = por %p108, %p109
    %p111 = scmp.le.s32.totalorder 1, %s9
    %p112 = scmp.lt.s32.totalorder %s9, 3
    %p113 = pnand %p111, %p112
    %p114 = pneg %p113
    // Predicated region
    $region9: #{res_block_forward.6} parent=5 // pred_check
      _
    $region10: #{res_block_forward.6} parent=5 // pred_check_branch
      %116 = sbr.rel (%p113) target = $region12
    $region11: #{res_block_forward.6} parent=5 // pred_region
      %s117 = ssub.s32 %s9, 1
      // Predicated region
      $region13: #{res_block_forward.6} parent=11 // pred_check
        %p118 = pneg %p56
      $region14: #{res_block_forward.6} parent=11 // pred_check_branch
        %120 = sbr.rel (%p118) target = $region16
      $region15: #{res_block_forward.6} parent=11 // pred_region
        _
      $region16: #{res_block_forward.6} parent=11 // pred_fallthru
        _
      // Predicated region
      $region17: #{res_block_forward.6} parent=11 // pred_check
        %p121 = pneg %p77
      $region18: #{res_block_forward.6} parent=11 // pred_check_branch
        %123 = sbr.rel (%p121) target = $region20
      $region19: #{res_block_forward.6} parent=11 // pred_region
        _
      $region20: #{res_block_forward.6} parent=11 // pred_fallthru
        _
    $region12: #{res_block_forward.6} parent=5 // pred_fallthru
      _
    %p124 = scmp.lt.s32.totalorder %s9, 2
    // Predicated region
    $region21: #{res_block_forward.6} parent=5 // pred_check
      %p125 = pneg %p124
    $region22: #{res_block_forward.6} parent=5 // pred_check_branch
      %127 = sbr.rel (%p125) target = $region24
    $region23: #{res_block_forward.6} parent=5 // pred_region
      // Predicated region
      $region25: #{res_block_forward.6} parent=23 // pred_check
        %p128 = pneg %p29
      $region26: #{res_block_forward.6} parent=23 // pred_check_branch
        %130 = sbr.rel (%p128) target = $region28
      $region27: #{res_block_forward.6} parent=23 // pred_region
        %s131 = smul.u32 8, %s9
        %p132 = scmp.lt.s32.totalorder %s131, 15
        %s133 = scalar_select %p132, %s131, 15
        %s134 = smul.addr %s133, 4
        %s135 = scalar_lea.vmem %s0, %s134
        %s136 = smul.u32 8, %s9
      $region28: #{res_block_forward.6} parent=23 // pred_fallthru
        _
    $region24: #{res_block_forward.6} parent=5 // pred_fallthru
      _
    %p137 = scmp.le.s32.totalorder 1, %s9
    %p138 = scmp.lt.s32.totalorder %s9, 3
    %p139 = pnand %p137, %p138
    %p140 = pneg %p139
    // Predicated region
    $region29: #{res_block_forward.6} parent=5 // pred_check
      _
    $region30: #{res_block_forward.6} parent=5 // pred_check_branch
      %142 = sbr.rel (%p139) target = $region32
    $region31: #{res_block_forward.6} parent=5 // pred_region
      %s143 = ssub.s32 %s9, 1
      %s144 = smul.u32 8, %s14
      %p145 = scmp.lt.s32.totalorder %s144, 15
      %s146 = scalar_select %p145, %s144, 15
      %s147 = smul.addr %s146, 4
      %s148 = scalar_lea.vmem %s0, %s147
      %p149 = pneg %p35
      %p150 = pneg %p32
      %p151 = pneg %p56
      %p152 = pneg %p53
      %p153 = pneg %p77
      %p154 = pneg %p74
      %p155 = pneg %p103
      %p156 = pneg %p100
      %s157 = smul.u32 8, %s14
      %p158 = scmp.lt.s32.totalorder %s157, 15
      %s159 = scalar_select %p158, %s157, 15
      %s160 = smul.addr %s159, 4
      %s161 = scalar_lea.vmem %s3, %s160
      %s162 = smul.u32 8, %s14
      %p163 = scmp.lt.s32.totalorder %s162, 15
      %s164 = scalar_select %p163, %s162, 15
      %s165 = smul.addr %s164, 4
      %s166 = scalar_lea.vmem %s0, %s165
      %s167 = smul.u32 8, %s14
      %s168 = smul.u32 8, %s14
      %p169 = scmp.lt.s32.totalorder %s168, 15
      %s170 = scalar_select %p169, %s168, 15
      %s171 = smul.addr %s170, 4
      %s172 = scalar_lea.vmem %s3, %s171
      %s173 = smul.u32 8, %s14
      %v174 = vld [vmem:[%s166] sm:$0xf]
      %v175 = vld [vmem:[%s166 + $0x4] sm:$0xf]
      %v176 = vld [vmem:[%s166 + $0x8] sm:$0xf]
      %v177 = vld [vmem:[%s166 + $0xc] sm:$0xf]
      %v178 = vld [vmem:[%s166 + $0x10] sm:$0xf]
      %v179 = vld [vmem:[%s166 + $0x14] sm:$0xf]
      %v180 = vld [vmem:[%s166 + $0x18] sm:$0xf]
      %v181 = vld [vmem:[%s166 + $0x1c] sm:$0xf]
      %v182 = vunpack.c.l.bf16 %v174
      %v183 = vunpack.c.l.bf16 %v175
      %v184 = vunpack.c.l.bf16 %v176
      %v185 = vunpack.c.l.bf16 %v177
      %v186 = vunpack.c.l.bf16 %v178
      %v187 = vunpack.c.l.bf16 %v179
      %v188 = vunpack.c.l.bf16 %v180
      %v189 = vunpack.c.l.bf16 %v181
      %v190 = vld [vmem:[%s1] sm:$0x1]
      %v192 = vperm.slane %v190, 0
      %v194 = vmul.f32 %v182, %v192
      %v195 = vmul.f32 %v183, %v192
      %v196 = vmul.f32 %v184, %v192
      %v197 = vmul.f32 %v185, %v192
      %v198 = vmul.f32 %v186, %v192
      %v199 = vmul.f32 %v187, %v192
      %v200 = vmul.f32 %v188, %v192
      %v201 = vmul.f32 %v189, %v192
      %v202 = vld [vmem:[%s2] sm:$0x1]
      %v204 = vperm.slane %v202, 0
      %v206 = vadd.f32 %v194, %v204
      %v207 = vadd.f32 %v195, %v204
      %v208 = vadd.f32 %v196, %v204
      %v209 = vadd.f32 %v197, %v204
      %v210 = vadd.f32 %v198, %v204
      %v211 = vadd.f32 %v199, %v204
      %v212 = vadd.f32 %v200, %v204
      %v213 = vadd.f32 %v201, %v204
      %v214 = vmax.f32 %v206, 0.0
      %v215 = vmax.f32 %v207, 0.0
      %v216 = vmax.f32 %v208, 0.0
      %v217 = vmax.f32 %v209, 0.0
      %v218 = vmax.f32 %v210, 0.0
      %v219 = vmax.f32 %v211, 0.0
      %v220 = vmax.f32 %v212, 0.0
      %v221 = vmax.f32 %v213, 0.0
      %v222 = vpack.c.bf16 %v214, %v214
      %v223 = vpack.c.bf16 %v215, %v215
      %v224 = vpack.c.bf16 %v216, %v216
      %v225 = vpack.c.bf16 %v217, %v217
      %v226 = vpack.c.bf16 %v218, %v218
      %v227 = vpack.c.bf16 %v219, %v219
      %v228 = vpack.c.bf16 %v220, %v220
      %v229 = vpack.c.bf16 %v221, %v221
      %230 = vst [vmem:[%s172] sm:$0xf] %v222
      %231 = vst [vmem:[%s172 + $0x4] sm:$0xf] %v223
      %232 = vst [vmem:[%s172 + $0x8] sm:$0xf] %v224
      %233 = vst [vmem:[%s172 + $0xc] sm:$0xf] %v225
      %234 = vst [vmem:[%s172 + $0x10] sm:$0xf] %v226
      %235 = vst [vmem:[%s172 + $0x14] sm:$0xf] %v227
      %236 = vst [vmem:[%s172 + $0x18] sm:$0xf] %v228
      %237 = vst [vmem:[%s172 + $0x1c] sm:$0xf] %v229
      %s238 = smul.u32 8, %s14
      %p239 = scmp.lt.s32.totalorder %s238, 15
      %s240 = scalar_select %p239, %s238, 15
      %s241 = smul.addr %s240, 4
      %s242 = scalar_lea.vmem %s3, %s241
      // Predicated region
      $region33: #{res_block_forward.6} parent=31 // pred_check
        %p243 = pneg %p100
      $region34: #{res_block_forward.6} parent=31 // pred_check_branch
        %245 = sbr.rel (%p243) target = $region36
      $region35: #{res_block_forward.6} parent=31 // pred_region
        %s246 = smul.u32 8, %s14
      $region36: #{res_block_forward.6} parent=31 // pred_fallthru
        _
    $region32: #{res_block_forward.6} parent=5 // pred_fallthru
      _
    %p247 = scmp.le.s32.totalorder 2, %s9
    // Predicated region
    $region37: #{res_block_forward.6} parent=5 // pred_check
      %p248 = pneg %p247
    $region38: #{res_block_forward.6} parent=5 // pred_check_branch
      %250 = sbr.rel (%p248) target = $region40
    $region39: #{res_block_forward.6} parent=5 // pred_region
      %s251 = ssub.s32 %s9, 2
      // Predicated region
      $region41: #{res_block_forward.6} parent=39 // pred_check
        %p252 = pneg %p106
      $region42: #{res_block_forward.6} parent=39 // pred_check_branch
        %254 = sbr.rel (%p252) target = $region44
      $region43: #{res_block_forward.6} parent=39 // pred_region
        %s255 = smul.u32 8, %s15
        %p256 = scmp.lt.s32.totalorder %s255, 15
        %s257 = scalar_select %p256, %s255, 15
        %s258 = smul.addr %s257, 4
        %s259 = scalar_lea.vmem %s3, %s258
      $region44: #{res_block_forward.6} parent=39 // pred_fallthru
        _
    $region40: #{res_block_forward.6} parent=5 // pred_fallthru
      _
  $region6: #{res_block_forward.6} parent=0 // loop_footer
    %s13 = sadd.s32 1, %s9
  $region7: #{res_block_forward.6} parent=0 // loop_footer_branch
    %8 = sbr.rel target = $region3
  $region8: #{res_block_forward.6} parent=0 // loop_exit
    _

// kernel: res_block_forward.5
$region0: #{res_block_forward.5}
  #allocation0 [shape = 'u32[]', space=smem, size = 0x4, offset = 0x4, fixed_abs, tag = 'smem constant byte address 0x4 - core index']
  #allocation1 [shape = 'u32[72,128]{1,0:T(1,128)}', space=vmem, size = 0x9000, scoped, tag = 'internal scratch']
  %s0 = inlined_call_operand.vmem [shape: bf16[128,128], index: 0, kind: input, shape index: {}]
  %s1 = inlined_call_operand.vmem [shape: bf16[128,128], index: 1, kind: input, shape index: {}]
  %s2 = inlined_call_operand.vmem [shape: bf16[128,128], index: 2, kind: output, shape index: {0}]
  %s3 = inlined_call_operand.vmem [shape: f32[2,2,128], index: 3, kind: output, shape index: {1}]
  %4 = xla_tuple %s2, %s3
  %s5 = sld [smem:[#allocation0]]
  $region49: #{res_block_forward.5} parent=0
    _
  %s7 = ssub.s32 1, %s5
  %s8 = scalar_select 0, %s7, %s5
  loop: start=0, step=1, limit=4
  $region2: #{res_block_forward.5} parent=0 // loop_pre_header
    _
  $region3: #{res_block_forward.5} parent=0 // loop_header
    %s10 = sphi 0, %s14
    %p11 = scmp.ge.s32.totalorder %s10, 4
    %s20 = sphi 0, %s22
    %s23 = sphi 0, %s20
    %s24 = sphi 0, %s23
    %s40 = sphi 0, %s24
    %s44 = sphi 0, %s44
    %s46 = sphi 0, %s44
    %s47 = sphi 0, %s46
    %s61 = sphi 0, %s47
    %s67 = sphi 0, %s69
    %s70 = sphi 0, %s67
    %s71 = sphi 0, %s70
    %s87 = sphi 0, %s71
    %s93 = sphi 0, %s95
    %s96 = sphi 0, %s93
    %s97 = sphi 0, %s96
    %s113 = sphi 0, %s97
  $region4: #{res_block_forward.5} parent=0 // loop_header_branch
    %13 = sbr.rel (%p11) target = $region8
  $region5: #{res_block_forward.5} parent=0 // loop_body
    %s15 = ssub.s32 %s10, 1
    %s16 = ssub.s32 %s10, 2
    %s17 = sadd.s32 %s10, 1
    %s18 = ssub.s32 %s10, %s17
    %p19 = scmp.eq.s32.totalorder %s18, 0
    %s21 = sadd.s32 %s20, 1
    %s22 = scalar_select %p19, %s20, %s21
    %p25 = pneg %p19
    %p26 = scmp.eq.s32.totalorder %s10, 1
    %p27 = por %p25, %p26
    %p28 = scmp.ne.s32.totalorder %s20, %s23
    %p29 = scmp.eq.s32.totalorder %s10, 0
    %p30 = por %p28, %p29
    %p31 = scmp.ne.s32.totalorder %s20, %s23
    %p32 = scmp.eq.s32.totalorder %s15, 1
    %p33 = por %p31, %p32
    %p34 = scmp.ne.s32.totalorder %s23, %s24
    %p35 = scmp.eq.s32.totalorder %s15, 0
    %p36 = por %p34, %p35
    %p37 = scmp.ne.s32.totalorder %s23, %s24
    %p38 = scmp.eq.s32.totalorder %s16, 1
    %p39 = por %p37, %p38
    %p41 = scmp.ne.s32.totalorder %s24, %s40
    %p42 = scmp.eq.s32.totalorder %s16, 0
    %p43 = por %p41, %p42
    %s45 = sadd.s32 %s44, 1
    %p48 = scmp.eq.s32.totalorder %s10, 1
    %p49 = scmp.ne.s32.totalorder %s44, %s46
    %p50 = scmp.eq.s32.totalorder %s10, 0
    %p51 = por %p49, %p50
    %p52 = scmp.ne.s32.totalorder %s44, %s46
    %p53 = scmp.eq.s32.totalorder %s15, 1
    %p54 = por %p52, %p53
    %p55 = scmp.ne.s32.totalorder %s46, %s47
    %p56 = scmp.eq.s32.totalorder %s15, 0
    %p57 = por %p55, %p56
    %p58 = scmp.ne.s32.totalorder %s46, %s47
    %p59 = scmp.eq.s32.totalorder %s16, 1
    %p60 = por %p58, %p59
    %p62 = scmp.ne.s32.totalorder %s47, %s61
    %p63 = scmp.eq.s32.totalorder %s16, 0
    %p64 = por %p62, %p63
    %s65 = ssub.s32 %s10, %s17
    %p66 = scmp.eq.s32.totalorder %s65, 0
    %s68 = sadd.s32 %s67, 1
    %s69 = scalar_select %p66, %s67, %s68
    %p72 = pneg %p66
    %p73 = scmp.eq.s32.totalorder %s10, 1
    %p74 = por %p72, %p73
    %p75 = scmp.ne.s32.totalorder %s67, %s70
    %p76 = scmp.eq.s32.totalorder %s10, 0
    %p77 = por %p75, %p76
    %p78 = scmp.ne.s32.totalorder %s67, %s70
    %p79 = scmp.eq.s32.totalorder %s15, 1
    %p80 = por %p78, %p79
    %p81 = scmp.ne.s32.totalorder %s70, %s71
    %p82 = scmp.eq.s32.totalorder %s15, 0
    %p83 = por %p81, %p82
    %p84 = scmp.ne.s32.totalorder %s70, %s71
    %p85 = scmp.eq.s32.totalorder %s16, 1
    %p86 = por %p84, %p85
    %p88 = scmp.ne.s32.totalorder %s71, %s87
    %p89 = scmp.eq.s32.totalorder %s16, 0
    %p90 = por %p88, %p89
    %s91 = ssub.s32 %s10, %s17
    %p92 = scmp.eq.s32.totalorder %s91, 0
    %s94 = sadd.s32 %s93, 1
    %s95 = scalar_select %p92, %s93, %s94
    %p98 = pneg %p92
    %p99 = scmp.eq.s32.totalorder %s10, 1
    %p100 = por %p98, %p99
    %p101 = scmp.ne.s32.totalorder %s93, %s96
    %p102 = scmp.eq.s32.totalorder %s10, 0
    %p103 = por %p101, %p102
    %p104 = scmp.ne.s32.totalorder %s93, %s96
    %p105 = scmp.eq.s32.totalorder %s15, 1
    %p106 = por %p104, %p105
    %p107 = scmp.ne.s32.totalorder %s96, %s97
    %p108 = scmp.eq.s32.totalorder %s15, 0
    %p109 = por %p107, %p108
    %p110 = scmp.ne.s32.totalorder %s96, %s97
    %p111 = scmp.eq.s32.totalorder %s16, 1
    %p112 = por %p110, %p111
    %p114 = scmp.ne.s32.totalorder %s97, %s113
    %p115 = scmp.eq.s32.totalorder %s16, 0
    %p116 = por %p114, %p115
    %p117 = scmp.le.s32.totalorder 1, %s10
    %p118 = scmp.lt.s32.totalorder %s10, 3
    %p119 = pnand %p117, %p118
    %p120 = pneg %p119
    // Predicated region
    $region9: #{res_block_forward.5} parent=5 // pred_check
      _
    $region10: #{res_block_forward.5} parent=5 // pred_check_branch
      %122 = sbr.rel (%p119) target = $region12
    $region11: #{res_block_forward.5} parent=5 // pred_region
      %s123 = ssub.s32 %s10, 1
      // Predicated region
      $region13: #{res_block_forward.5} parent=11 // pred_check
        %p124 = pneg %p57
      $region14: #{res_block_forward.5} parent=11 // pred_check_branch
        %126 = sbr.rel (%p124) target = $region16
      $region15: #{res_block_forward.5} parent=11 // pred_region
        _
      $region16: #{res_block_forward.5} parent=11 // pred_fallthru
        _
    $region12: #{res_block_forward.5} parent=5 // pred_fallthru
      _
    %p127 = scmp.lt.s32.totalorder %s10, 2
    // Predicated region
    $region17: #{res_block_forward.5} parent=5 // pred_check
      %p128 = pneg %p127
    $region18: #{res_block_forward.5} parent=5 // pred_check_branch
      %130 = sbr.rel (%p128) target = $region20
    $region19: #{res_block_forward.5} parent=5 // pred_region
      // Predicated region
      $region21: #{res_block_forward.5} parent=19 // pred_check
        %p131 = pneg %p30
      $region22: #{res_block_forward.5} parent=19 // pred_check_branch
        %133 = sbr.rel (%p131) target = $region24
      $region23: #{res_block_forward.5} parent=19 // pred_region
        %s134 = smul.u32 8, %s10
        %p135 = scmp.lt.s32.totalorder %s134, 15
        %s136 = scalar_select %p135, %s134, 15
        %s137 = smul.addr %s136, 4
        %s138 = scalar_lea.vmem %s0, %s137
        %s139 = smul.u32 8, %s10
      $region24: #{res_block_forward.5} parent=19 // pred_fallthru
        _
    $region20: #{res_block_forward.5} parent=5 // pred_fallthru
      _
    %p140 = scmp.le.s32.totalorder 1, %s10
    %p141 = scmp.lt.s32.totalorder %s10, 3
    %p142 = pnand %p140, %p141
    %p143 = pneg %p142
    // Predicated region
    $region25: #{res_block_forward.5} parent=5 // pred_check
      _
    $region26: #{res_block_forward.5} parent=5 // pred_check_branch
      %145 = sbr.rel (%p142) target = $region28
    $region27: #{res_block_forward.5} parent=5 // pred_region
      %s146 = ssub.s32 %s10, 1
      %s147 = smul.u32 8, %s15
      %p148 = scmp.lt.s32.totalorder %s147, 15
      %s149 = scalar_select %p148, %s147, 15
      %s150 = smul.addr %s149, 4
      %s151 = scalar_lea.vmem %s0, %s150
      %p152 = pneg %p36
      %p153 = pneg %p33
      %p154 = pneg %p57
      %p155 = pneg %p54
      %p156 = pneg %p83
      %p157 = pneg %p80
      %s158 = smul.u32 8, %s15
      %p159 = scmp.lt.s32.totalorder %s158, 15
      %s160 = scalar_select %p159, %s158, 15
      %s161 = smul.addr %s160, 4
      %s162 = scalar_lea.vmem %s2, %s161
      %p163 = pneg %p109
      %p164 = pneg %p106
      %p165 = scmp.lt.s32.totalorder %s15, 1
      %s166 = scalar_select %p165, %s15, 1
      %s167 = smul.addr %s166, 2
      %s168 = scalar_lea.vmem %s3, %s167
      %s169 = smul.u32 8, %s15
      %p170 = scmp.lt.s32.totalorder %s169, 15
      %s171 = scalar_select %p170, %s169, 15
      %s172 = smul.addr %s171, 4
      %s173 = scalar_lea.vmem %s0, %s172
      %s174 = smul.u32 8, %s15
      %s175 = smul.u32 8, %s15
      %p176 = scmp.lt.s32.totalorder %s175, 15
      %s177 = scalar_select %p176, %s175, 15
      %s178 = smul.addr %s177, 4
      %s179 = scalar_lea.vmem %s2, %s178
      %s180 = smul.u32 8, %s15
      %p181 = scmp.lt.s32.totalorder %s15, 1
      %s182 = scalar_select %p181, %s15, 1
      %s183 = smul.addr %s182, 2
      %s184 = scalar_lea.vmem %s3, %s183
      %v185 = vld [vmem:[%s173] sm:$0xf]
      %v186 = vld [vmem:[%s173 + $0x4] sm:$0xf]
      %v187 = vld [vmem:[%s173 + $0x8] sm:$0xf]
      %v188 = vld [vmem:[%s173 + $0xc] sm:$0xf]
      %v189 = vld [vmem:[%s173 + $0x10] sm:$0xf]
      %v190 = vld [vmem:[%s173 + $0x14] sm:$0xf]
      %v191 = vld [vmem:[%s173 + $0x18] sm:$0xf]
      %v192 = vld [vmem:[%s173 + $0x1c] sm:$0xf]
      %v193 = vld [vmem:[%s1] sm:$0xf]
      %v194 = vld [vmem:[%s1 + $0x4] sm:$0xf]
      %v195 = vld [vmem:[%s1 + $0x8] sm:$0xf]
      %v196 = vld [vmem:[%s1 + $0xc] sm:$0xf]
      %v197 = vld [vmem:[%s1 + $0x10] sm:$0xf]
      %v198 = vld [vmem:[%s1 + $0x14] sm:$0xf]
      %v199 = vld [vmem:[%s1 + $0x18] sm:$0xf]
      %v200 = vld [vmem:[%s1 + $0x1c] sm:$0xf]
      %v201 = vld [vmem:[%s1 + $0x20] sm:$0xf]
      %v202 = vld [vmem:[%s1 + $0x24] sm:$0xf]
      %v203 = vld [vmem:[%s1 + $0x28] sm:$0xf]
      %v204 = vld [vmem:[%s1 + $0x2c] sm:$0xf]
      %v205 = vld [vmem:[%s1 + $0x30] sm:$0xf]
      %v206 = vld [vmem:[%s1 + $0x34] sm:$0xf]
      %v207 = vld [vmem:[%s1 + $0x38] sm:$0xf]
      %v208 = vld [vmem:[%s1 + $0x3c] sm:$0xf]
      %v217 = vunpack.c.l.b16 %v185
      %v218 = vunpack.c.l.b16 %v186
      %v219 = vunpack.c.l.b16 %v187
      %v220 = vunpack.c.l.b16 %v188
      %v221 = vunpack.c.l.b16 %v189
      %v222 = vunpack.c.l.b16 %v190
      %v223 = vunpack.c.l.b16 %v191
      %v224 = vunpack.c.l.b16 %v192
      %v225 = vpack.c.b16 %v218, %v217
      %v226 = vpack.c.b16 %v220, %v219
      %v227 = vpack.c.b16 %v222, %v221
      %v228 = vpack.c.b16 %v224, %v223
      %v249 = vunpack.c.l.b16 %v193
      %v250 = vunpack.c.l.b16 %v194
      %v251 = vunpack.c.l.b16 %v195
      %v252 = vunpack.c.l.b16 %v196
      %v253 = vunpack.c.l.b16 %v197
      %v254 = vunpack.c.l.b16 %v198
      %v255 = vunpack.c.l.b16 %v199
      %v256 = vunpack.c.l.b16 %v200
      %v257 = vunpack.c.l.b16 %v201
      %v258 = vunpack.c.l.b16 %v202
      %v259 = vunpack.c.l.b16 %v203
      %v260 = vunpack.c.l.b16 %v204
      %v261 = vunpack.c.l.b16 %v205
      %v262 = vunpack.c.l.b16 %v206
      %v263 = vunpack.c.l.b16 %v207
      %v264 = vunpack.c.l.b16 %v208
      %v265 = vpack.c.b16 %v250, %v249
      %v266 = vpack.c.b16 %v252, %v251
      %v267 = vpack.c.b16 %v254, %v253
      %v268 = vpack.c.b16 %v256, %v255
      %v269 = vpack.c.b16 %v258, %v257
      %v270 = vpack.c.b16 %v260, %v259
      %v271 = vpack.c.b16 %v262, %v261
      %v272 = vpack.c.b16 %v264, %v263
      %281 = vmatpush.bf16.msra.mxu0 %v272
      %282 = vmatpush.bf16.msra.mxu0 %v271
      %283 = vmatpush.bf16.msra.mxu0 %v270
      %284 = vmatpush.bf16.msra.mxu0 %v269
      %285 = vmatpush.bf16.msra.mxu0 %v268
      %286 = vmatpush.bf16.msra.mxu0 %v267
      %287 = vmatpush.bf16.msra.mxu0 %v266
      %288 = vmatpush.bf16.msra.mxu0 %v265
      %289 = vmatmul.bf16.gmra.mxu0 %v225
      %v290 = vpop.f32.mrf.mxu0
      %v291 = vadd.f32 0.0, %v290
      %v292 = vpop.f32.mrf.mxu0
      %v293 = vadd.f32 0.0, %v292
      %294 = vmatmul.bf16.gmra.mxu0 %v226
      %v295 = vpop.f32.mrf.mxu0
      %v296 = vadd.f32 0.0, %v295
      %v297 = vpop.f32.mrf.mxu0
      %v298 = vadd.f32 0.0, %v297
      %299 = vmatmul.bf16.gmra.mxu0 %v227
      %v300 = vpop.f32.mrf.mxu0
      %v301 = vadd.f32 0.0, %v300
      %v302 = vpop.f32.mrf.mxu0
      %v303 = vadd.f32 0.0, %v302
      %304 = vmatmul.bf16.gmra.mxu0 %v228
      %v305 = vpop.f32.mrf.mxu0
      %v306 = vadd.f32 0.0, %v305
      %v307 = vpop.f32.mrf.mxu0
      %v308 = vadd.f32 0.0, %v307
      %309 = vdwg.mxu0
      %v310 = vadd.f32 %v291, %v293
      %v311 = vadd.f32 %v310, %v296
      %v312 = vadd.f32 %v311, %v298
      %v313 = vadd.f32 %v312, %v301
      %v314 = vadd.f32 %v313, %v303
      %v315 = vadd.f32 %v314, %v306
      %v316 = vadd.f32 %v315, %v308
      %v317 = vrot.slane %v316, 4
      %v318 = vadd.f32 %v316, %v317
      %v319 = vrot.slane %v318, 2
      %v320 = vadd.f32 %v318, %v319
      %v321 = vrot.slane %v320, 1
      %v322 = vadd.f32 %v320, %v321
      %323 = vst [vmem:[%s184] sm:$0x1] %v322
      %v324 = vmul.f32 %v291, %v291
      %v325 = vmul.f32 %v293, %v293
      %v326 = vmul.f32 %v296, %v296
      %v327 = vmul.f32 %v298, %v298
      %v328 = vmul.f32 %v301, %v301
      %v329 = vmul.f32 %v303, %v303
      %v330 = vmul.f32 %v306, %v306
      %v331 = vmul.f32 %v308, %v308
      %v332 = vadd.f32 %v324, %v325
      %v333 = vadd.f32 %v332, %v326
      %v334 = vadd.f32 %v333, %v327
      %v335 = vadd.f32 %v334, %v328
      %v336 = vadd.f32 %v335, %v329
      %v337 = vadd.f32 %v336, %v330
      %v338 = vadd.f32 %v337, %v331
      %v339 = vrot.slane %v338, 4
      %v340 = vadd.f32 %v338, %v339
      %v341 = vrot.slane %v340, 2
      %v342 = vadd.f32 %v340, %v341
      %v343 = vrot.slane %v342, 1
      %v344 = vadd.f32 %v342, %v343
      %345 = vst [vmem:[%s184 + $0x1] sm:$0x1] %v344
      %v346 = vpack.c.bf16 %v291, %v291
      %v347 = vpack.c.bf16 %v293, %v293
      %v348 = vpack.c.bf16 %v296, %v296
      %v349 = vpack.c.bf16 %v298, %v298
      %v350 = vpack.c.bf16 %v301, %v301
      %v351 = vpack.c.bf16 %v303, %v303
      %v352 = vpack.c.bf16 %v306, %v306
      %v353 = vpack.c.bf16 %v308, %v308
      %354 = vst [vmem:[%s179] sm:$0xf] %v346
      %355 = vst [vmem:[%s179 + $0x4] sm:$0xf] %v347
      %356 = vst [vmem:[%s179 + $0x8] sm:$0xf] %v348
      %357 = vst [vmem:[%s179 + $0xc] sm:$0xf] %v349
      %358 = vst [vmem:[%s179 + $0x10] sm:$0xf] %v350
      %359 = vst [vmem:[%s179 + $0x14] sm:$0xf] %v351
      %360 = vst [vmem:[%s179 + $0x18] sm:$0xf] %v352
      %361 = vst [vmem:[%s179 + $0x1c] sm:$0xf] %v353
      %s362 = smul.u32 8, %s15
      %p363 = scmp.lt.s32.totalorder %s362, 15
      %s364 = scalar_select %p363, %s362, 15
      %s365 = smul.addr %s364, 4
      %s366 = scalar_lea.vmem %s2, %s365
      %p367 = scmp.lt.s32.totalorder %s15, 1
      %s368 = scalar_select %p367, %s15, 1
      %s369 = smul.addr %s368, 2
      %s370 = scalar_lea.vmem %s3, %s369
      // Predicated region
      $region29: #{res_block_forward.5} parent=27 // pred_check
        %p371 = pneg %p80
      $region30: #{res_block_forward.5} parent=27 // pred_check_branch
        %373 = sbr.rel (%p371) target = $region32
      $region31: #{res_block_forward.5} parent=27 // pred_region
        %s374 = smul.u32 8, %s15
      $region32: #{res_block_forward.5} parent=27 // pred_fallthru
        _
      // Predicated region
      $region33: #{res_block_forward.5} parent=27 // pred_check
        %p375 = pneg %p106
      $region34: #{res_block_forward.5} parent=27 // pred_check_branch
        %377 = sbr.rel (%p375) target = $region36
      $region35: #{res_block_forward.5} parent=27 // pred_region
        _
      $region36: #{res_block_forward.5} parent=27 // pred_fallthru
        _
    $region28: #{res_block_forward.5} parent=5 // pred_fallthru
      _
    %p378 = scmp.le.s32.totalorder 2, %s10
    // Predicated region
    $region37: #{res_block_forward.5} parent=5 // pred_check
      %p379 = pneg %p378
    $region38: #{res_block_forward.5} parent=5 // pred_check_branch
      %381 = sbr.rel (%p379) target = $region40
    $region39: #{res_block_forward.5} parent=5 // pred_region
      %s382 = ssub.s32 %s10, 2
      // Predicated region
      $region41: #{res_block_forward.5} parent=39 // pred_check
        %p383 = pneg %p86
      $region42: #{res_block_forward.5} parent=39 // pred_check_branch
        %385 = sbr.rel (%p383) target = $region44
      $region43: #{res_block_forward.5} parent=39 // pred_region
        %s386 = smul.u32 8, %s16
        %p387 = scmp.lt.s32.totalorder %s386, 15
        %s388 = scalar_select %p387, %s386, 15
        %s389 = smul.addr %s388, 4
        %s390 = scalar_lea.vmem %s2, %s389
      $region44: #{res_block_forward.5} parent=39 // pred_fallthru
        _
      // Predicated region
      $region45: #{res_block_forward.5} parent=39 // pred_check
        %p391 = pneg %p112
      $region46: #{res_block_forward.5} parent=39 // pred_check_branch
        %393 = sbr.rel (%p391) target = $region48
      $region47: #{res_block_forward.5} parent=39 // pred_region
        %p394 = scmp.lt.s32.totalorder %s16, 1
        %s395 = scalar_select %p394, %s16, 1
        %s396 = smul.addr %s395, 2
        %s397 = scalar_lea.vmem %s3, %s396
      $region48: #{res_block_forward.5} parent=39 // pred_fallthru
        _
    $region40: #{res_block_forward.5} parent=5 // pred_fallthru
      _
  $region6: #{res_block_forward.5} parent=0 // loop_footer
    %s14 = sadd.s32 1, %s10
  $region7: #{res_block_forward.5} parent=0 // loop_footer_branch
    %9 = sbr.rel target = $region3
  $region8: #{res_block_forward.5} parent=0 // loop_exit
    _

// kernel: res_block_forward.9
$region0: #{res_block_forward.9}
  #allocation0 [shape = 'u32[]', space=smem, size = 0x4, offset = 0x4, fixed_abs, tag = 'smem constant byte address 0x4 - core index']
  #allocation1 [shape = 'u32[72,128]{1,0:T(1,128)}', space=vmem, size = 0x9000, scoped, tag = 'internal scratch']
  %s0 = inlined_call_operand.vmem [shape: bf16[128,128], index: 0, kind: input, shape index: {}, may-alias: {0,6}]
  %s1 = inlined_call_operand.vmem [shape: f32[1,128], index: 1, kind: input, shape index: {}]
  %s2 = inlined_call_operand.vmem [shape: f32[1,128], index: 2, kind: input, shape index: {}]
  %s3 = inlined_call_operand.vmem [shape: bf16[128,128], index: 3, kind: input, shape index: {}]
  %s4 = inlined_call_operand.vmem [shape: f32[1,128], index: 4, kind: input, shape index: {}]
  %s5 = inlined_call_operand.vmem [shape: f32[1,128], index: 5, kind: input, shape index: {}]
  %s6 = inlined_call_operand.vmem [shape: bf16[128,128], index: 6, kind: output, shape index: {}, may-alias: {0,6}]
  %s7 = sld [smem:[#allocation0]]
  $region57: #{res_block_forward.9} parent=0
    _
  %s9 = ssub.s32 1, %s7
  %s10 = scalar_select 0, %s9, %s7
  loop: start=0, step=1, limit=4
  $region2: #{res_block_forward.9} parent=0 // loop_pre_header
    _
  $region3: #{res_block_forward.9} parent=0 // loop_header
    %s12 = sphi 0, %s16
    %p13 = scmp.ge.s32.totalorder %s12, 4
    %s22 = sphi 0, %s24
    %s25 = sphi 0, %s22
    %s26 = sphi 0, %s25
    %s42 = sphi 0, %s26
    %s46 = sphi 0, %s46
    %s48 = sphi 0, %s46
    %s49 = sphi 0, %s48
    %s63 = sphi 0, %s49
    %s67 = sphi 0, %s67
    %s69 = sphi 0, %s67
    %s70 = sphi 0, %s69
    %s84 = sphi 0, %s70
    %s90 = sphi 0, %s92
    %s93 = sphi 0, %s90
    %s94 = sphi 0, %s93
    %s110 = sphi 0, %s94
    %s114 = sphi 0, %s114
    %s116 = sphi 0, %s114
    %s117 = sphi 0, %s116
    %s131 = sphi 0, %s117
    %s135 = sphi 0, %s135
    %s137 = sphi 0, %s135
    %s138 = sphi 0, %s137
    %s152 = sphi 0, %s138
    %s158 = sphi 0, %s160
    %s161 = sphi 0, %s158
    %s162 = sphi 0, %s161
    %s178 = sphi 0, %s162
  $region4: #{res_block_forward.9} parent=0 // loop_header_branch
    %15 = sbr.rel (%p13) target = $region8
  $region5: #{res_block_forward.9} parent=0 // loop_body
    %s17 = ssub.s32 %s12, 1
    %s18 = ssub.s32 %s12, 2
    %s19 = sadd.s32 %s12, 1
    %s20 = ssub.s32 %s12, %s19
    %p21 = scmp.eq.s32.totalorder %s20, 0
    %s23 = sadd.s32 %s22, 1
    %s24 = scalar_select %p21, %s22, %s23
    %p27 = pneg %p21
    %p28 = scmp.eq.s32.totalorder %s12, 1
    %p29 = por %p27, %p28
    %p30 = scmp.ne.s32.totalorder %s22, %s25
    %p31 = scmp.eq.s32.totalorder %s12, 0
    %p32 = por %p30, %p31
    %p33 = scmp.ne.s32.totalorder %s22, %s25
    %p34 = scmp.eq.s32.totalorder %s17, 1
    %p35 = por %p33, %p34
    %p36 = scmp.ne.s32.totalorder %s25, %s26
    %p37 = scmp.eq.s32.totalorder %s17, 0
    %p38 = por %p36, %p37
    %p39 = scmp.ne.s32.totalorder %s25, %s26
    %p40 = scmp.eq.s32.totalorder %s18, 1
    %p41 = por %p39, %p40
    %p43 = scmp.ne.s32.totalorder %s26, %s42
    %p44 = scmp.eq.s32.totalorder %s18, 0
    %p45 = por %p43, %p44
    %s47 = sadd.s32 %s46, 1
    %p50 = scmp.eq.s32.totalorder %s12, 1
    %p51 = scmp.ne.s32.totalorder %s46, %s48
    %p52 = scmp.eq.s32.totalorder %s12, 0
    %p53 = por %p51, %p52
    %p54 = scmp.ne.s32.totalorder %s46, %s48
    %p55 = scmp.eq.s32.totalorder %s17, 1
    %p56 = por %p54, %p55
    %p57 = scmp.ne.s32.totalorder %s48, %s49
    %p58 = scmp.eq.s32.totalorder %s17, 0
    %p59 = por %p57, %p58
    %p60 = scmp.ne.s32.totalorder %s48, %s49
    %p61 = scmp.eq.s32.totalorder %s18, 1
    %p62 = por %p60, %p61
    %p64 = scmp.ne.s32.totalorder %s49, %s63
    %p65 = scmp.eq.s32.totalorder %s18, 0
    %p66 = por %p64, %p65
    %s68 = sadd.s32 %s67, 1
    %p71 = scmp.eq.s32.totalorder %s12, 1
    %p72 = scmp.ne.s32.totalorder %s67, %s69
    %p73 = scmp.eq.s32.totalorder %s12, 0
    %p74 = por %p72, %p73
    %p75 = scmp.ne.s32.totalorder %s67, %s69
    %p76 = scmp.eq.s32.totalorder %s17, 1
    %p77 = por %p75, %p76
    %p78 = scmp.ne.s32.totalorder %s69, %s70
    %p79 = scmp.eq.s32.totalorder %s17, 0
    %p80 = por %p78, %p79
    %p81 = scmp.ne.s32.totalorder %s69, %s70
    %p82 = scmp.eq.s32.totalorder %s18, 1
    %p83 = por %p81, %p82
    %p85 = scmp.ne.s32.totalorder %s70, %s84
    %p86 = scmp.eq.s32.totalorder %s18, 0
    %p87 = por %p85, %p86
    %s88 = ssub.s32 %s12, %s19
    %p89 = scmp.eq.s32.totalorder %s88, 0
    %s91 = sadd.s32 %s90, 1
    %s92 = scalar_select %p89, %s90, %s91
    %p95 = pneg %p89
    %p96 = scmp.eq.s32.totalorder %s12, 1
    %p97 = por %p95, %p96
    %p98 = scmp.ne.s32.totalorder %s90, %s93
    %p99 = scmp.eq.s32.totalorder %s12, 0
    %p100 = por %p98, %p99
    %p101 = scmp.ne.s32.totalorder %s90, %s93
    %p102 = scmp.eq.s32.totalorder %s17, 1
    %p103 = por %p101, %p102
    %p104 = scmp.ne.s32.totalorder %s93, %s94
    %p105 = scmp.eq.s32.totalorder %s17, 0
    %p106 = por %p104, %p105
    %p107 = scmp.ne.s32.totalorder %s93, %s94
    %p108 = scmp.eq.s32.totalorder %s18, 1
    %p109 = por %p107, %p108
    %p111 = scmp.ne.s32.totalorder %s94, %s110
    %p112 = scmp.eq.s32.totalorder %s18, 0
    %p113 = por %p111, %p112
    %s115 = sadd.s32 %s114, 1
    %p118 = scmp.eq.s32.totalorder %s12, 1
    %p119 = scmp.ne.s32.totalorder %s114, %s116
    %p120 = scmp.eq.s32.totalorder %s12, 0
    %p121 = por %p119, %p120
    %p122 = scmp.ne.s32.totalorder %s114, %s116
    %p123 = scmp.eq.s32.totalorder %s17, 1
    %p124 = por %p122, %p123
    %p125 = scmp.ne.s32.totalorder %s116, %s117
    %p126 = scmp.eq.s32.totalorder %s17, 0
    %p127 = por %p125, %p126
    %p128 = scmp.ne.s32.totalorder %s116, %s117
    %p129 = scmp.eq.s32.totalorder %s18, 1
    %p130 = por %p128, %p129
    %p132 = scmp.ne.s32.totalorder %s117, %s131
    %p133 = scmp.eq.s32.totalorder %s18, 0
    %p134 = por %p132, %p133
    %s136 = sadd.s32 %s135, 1
    %p139 = scmp.eq.s32.totalorder %s12, 1
    %p140 = scmp.ne.s32.totalorder %s135, %s137
    %p141 = scmp.eq.s32.totalorder %s12, 0
    %p142 = por %p140, %p141
    %p143 = scmp.ne.s32.totalorder %s135, %s137
    %p144 = scmp.eq.s32.totalorder %s17, 1
    %p145 = por %p143, %p144
    %p146 = scmp.ne.s32.totalorder %s137, %s138
    %p147 = scmp.eq.s32.totalorder %s17, 0
    %p148 = por %p146, %p147
    %p149 = scmp.ne.s32.totalorder %s137, %s138
    %p150 = scmp.eq.s32.totalorder %s18, 1
    %p151 = por %p149, %p150
    %p153 = scmp.ne.s32.totalorder %s138, %s152
    %p154 = scmp.eq.s32.totalorder %s18, 0
    %p155 = por %p153, %p154
    %s156 = ssub.s32 %s12, %s19
    %p157 = scmp.eq.s32.totalorder %s156, 0
    %s159 = sadd.s32 %s158, 1
    %s160 = scalar_select %p157, %s158, %s159
    %p163 = pneg %p157
    %p164 = scmp.eq.s32.totalorder %s12, 1
    %p165 = por %p163, %p164
    %p166 = scmp.ne.s32.totalorder %s158, %s161
    %p167 = scmp.eq.s32.totalorder %s12, 0
    %p168 = por %p166, %p167
    %p169 = scmp.ne.s32.totalorder %s158, %s161
    %p170 = scmp.eq.s32.totalorder %s17, 1
    %p171 = por %p169, %p170
    %p172 = scmp.ne.s32.totalorder %s161, %s162
    %p173 = scmp.eq.s32.totalorder %s17, 0
    %p174 = por %p172, %p173
    %p175 = scmp.ne.s32.totalorder %s161, %s162
    %p176 = scmp.eq.s32.totalorder %s18, 1
    %p177 = por %p175, %p176
    %p179 = scmp.ne.s32.totalorder %s162, %s178
    %p180 = scmp.eq.s32.totalorder %s18, 0
    %p181 = por %p179, %p180
    %p182 = scmp.le.s32.totalorder 1, %s12
    %p183 = scmp.lt.s32.totalorder %s12, 3
    %p184 = pnand %p182, %p183
    %p185 = pneg %p184
    // Predicated region
    $region9: #{res_block_forward.9} parent=5 // pred_check
      _
    $region10: #{res_block_forward.9} parent=5 // pred_check_branch
      %187 = sbr.rel (%p184) target = $region12
    $region11: #{res_block_forward.9} parent=5 // pred_region
      %s188 = ssub.s32 %s12, 1
      // Predicated region
      $region13: #{res_block_forward.9} parent=11 // pred_check
        %p189 = pneg %p59
      $region14: #{res_block_forward.9} parent=11 // pred_check_branch
        %191 = sbr.rel (%p189) target = $region16
      $region15: #{res_block_forward.9} parent=11 // pred_region
        _
      $region16: #{res_block_forward.9} parent=11 // pred_fallthru
        _
      // Predicated region
      $region17: #{res_block_forward.9} parent=11 // pred_check
        %p192 = pneg %p80
      $region18: #{res_block_forward.9} parent=11 // pred_check_branch
        %194 = sbr.rel (%p192) target = $region20
      $region19: #{res_block_forward.9} parent=11 // pred_region
        _
      $region20: #{res_block_forward.9} parent=11 // pred_fallthru
        _
      // Predicated region
      $region21: #{res_block_forward.9} parent=11 // pred_check
        %p195 = pneg %p127
      $region22: #{res_block_forward.9} parent=11 // pred_check_branch
        %197 = sbr.rel (%p195) target = $region24
      $region23: #{res_block_forward.9} parent=11 // pred_region
        _
      $region24: #{res_block_forward.9} parent=11 // pred_fallthru
        _
      // Predicated region
      $region25: #{res_block_forward.9} parent=11 // pred_check
        %p198 = pneg %p148
      $region26: #{res_block_forward.9} parent=11 // pred_check_branch
        %200 = sbr.rel (%p198) target = $region28
      $region27: #{res_block_forward.9} parent=11 // pred_region
        _
      $region28: #{res_block_forward.9} parent=11 // pred_fallthru
        _
    $region12: #{res_block_forward.9} parent=5 // pred_fallthru
      _
    %p201 = scmp.lt.s32.totalorder %s12, 2
    // Predicated region
    $region29: #{res_block_forward.9} parent=5 // pred_check
      %p202 = pneg %p201
    $region30: #{res_block_forward.9} parent=5 // pred_check_branch
      %204 = sbr.rel (%p202) target = $region32
    $region31: #{res_block_forward.9} parent=5 // pred_region
      // Predicated region
      $region33: #{res_block_forward.9} parent=31 // pred_check
        %p205 = pneg %p32
      $region34: #{res_block_forward.9} parent=31 // pred_check_branch
        %207 = sbr.rel (%p205) target = $region36
      $region35: #{res_block_forward.9} parent=31 // pred_region
        %s208 = smul.u32 8, %s12
        %p209 = scmp.lt.s32.totalorder %s208, 15
        %s210 = scalar_select %p209, %s208, 15
        %s211 = smul.addr %s210, 4
        %s212 = scalar_lea.vmem %s0, %s211
        %s213 = smul.u32 8, %s12
      $region36: #{res_block_forward.9} parent=31 // pred_fallthru
        _
      // Predicated region
      $region37: #{res_block_forward.9} parent=31 // pred_check
        %p214 = pneg %p100
      $region38: #{res_block_forward.9} parent=31 // pred_check_branch
        %216 = sbr.rel (%p214) target = $region40
      $region39: #{res_block_forward.9} parent=31 // pred_region
        %s217 = smul.u32 8, %s12
        %p218 = scmp.lt.s32.totalorder %s217, 15
        %s219 = scalar_select %p218, %s217, 15
        %s220 = smul.addr %s219, 4
        %s221 = scalar_lea.vmem %s3, %s220
        %s222 = smul.u32 8, %s12
      $region40: #{res_block_forward.9} parent=31 // pred_fallthru
        _
    $region32: #{res_block_forward.9} parent=5 // pred_fallthru
      _
    %p223 = scmp.le.s32.totalorder 1, %s12
    %p224 = scmp.lt.s32.totalorder %s12, 3
    %p225 = pnand %p223, %p224
    %p226 = pneg %p225
    // Predicated region
    $region41: #{res_block_forward.9} parent=5 // pred_check
      _
    $region42: #{res_block_forward.9} parent=5 // pred_check_branch
      %228 = sbr.rel (%p225) target = $region44
    $region43: #{res_block_forward.9} parent=5 // pred_region
      %s229 = ssub.s32 %s12, 1
      %s230 = smul.u32 8, %s17
      %p231 = scmp.lt.s32.totalorder %s230, 15
      %s232 = scalar_select %p231, %s230, 15
      %s233 = smul.addr %s232, 4
      %s234 = scalar_lea.vmem %s0, %s233
      %p235 = pneg %p38
      %p236 = pneg %p35
      %p237 = pneg %p59
      %p238 = pneg %p56
      %p239 = pneg %p80
      %p240 = pneg %p77
      %s241 = smul.u32 8, %s17
      %p242 = scmp.lt.s32.totalorder %s241, 15
      %s243 = scalar_select %p242, %s241, 15
      %s244 = smul.addr %s243, 4
      %s245 = scalar_lea.vmem %s3, %s244
      %p246 = pneg %p106
      %p247 = pneg %p103
      %p248 = pneg %p127
      %p249 = pneg %p124
      %p250 = pneg %p148
      %p251 = pneg %p145
      %p252 = pneg %p174
      %p253 = pneg %p171
      %s254 = smul.u32 8, %s17
      %p255 = scmp.lt.s32.totalorder %s254, 15
      %s256 = scalar_select %p255, %s254, 15
      %s257 = smul.addr %s256, 4
      %s258 = scalar_lea.vmem %s6, %s257
      %s259 = smul.u32 8, %s17
      %p260 = scmp.lt.s32.totalorder %s259, 15
      %s261 = scalar_select %p260, %s259, 15
      %s262 = smul.addr %s261, 4
      %s263 = scalar_lea.vmem %s0, %s262
      %s264 = smul.u32 8, %s17
      %s265 = smul.u32 8, %s17
      %p266 = scmp.lt.s32.totalorder %s265, 15
      %s267 = scalar_select %p266, %s265, 15
      %s268 = smul.addr %s267, 4
      %s269 = scalar_lea.vmem %s3, %s268
      %s270 = smul.u32 8, %s17
      %s271 = smul.u32 8, %s17
      %p272 = scmp.lt.s32.totalorder %s271, 15
      %s273 = scalar_select %p272, %s271, 15
      %s274 = smul.addr %s273, 4
      %s275 = scalar_lea.vmem %s6, %s274
      %s276 = smul.u32 8, %s17
      %v277 = vld [vmem:[%s263] sm:$0xf]
      %v278 = vld [vmem:[%s263 + $0x4] sm:$0xf]
      %v279 = vld [vmem:[%s263 + $0x8] sm:$0xf]
      %v280 = vld [vmem:[%s263 + $0xc] sm:$0xf]
      %v281 = vld [vmem:[%s263 + $0x10] sm:$0xf]
      %v282 = vld [vmem:[%s263 + $0x14] sm:$0xf]
      %v283 = vld [vmem:[%s263 + $0x18] sm:$0xf]
      %v284 = vld [vmem:[%s263 + $0x1c] sm:$0xf]
      %v285 = vunpack.c.l.bf16 %v277
      %v286 = vunpack.c.l.bf16 %v278
      %v287 = vunpack.c.l.bf16 %v279
      %v288 = vunpack.c.l.bf16 %v280
      %v289 = vunpack.c.l.bf16 %v281
      %v290 = vunpack.c.l.bf16 %v282
      %v291 = vunpack.c.l.bf16 %v283
      %v292 = vunpack.c.l.bf16 %v284
      %v293 = vld [vmem:[%s1] sm:$0x1]
      %v295 = vperm.slane %v293, 0
      %v297 = vmul.f32 %v285, %v295
      %v298 = vmul.f32 %v286, %v295
      %v299 = vmul.f32 %v287, %v295
      %v300 = vmul.f32 %v288, %v295
      %v301 = vmul.f32 %v289, %v295
      %v302 = vmul.f32 %v290, %v295
      %v303 = vmul.f32 %v291, %v295
      %v304 = vmul.f32 %v292, %v295
      %v305 = vld [vmem:[%s2] sm:$0x1]
      %v307 = vperm.slane %v305, 0
      %v309 = vadd.f32 %v297, %v307
      %v310 = vadd.f32 %v298, %v307
      %v311 = vadd.f32 %v299, %v307
      %v312 = vadd.f32 %v300, %v307
      %v313 = vadd.f32 %v301, %v307
      %v314 = vadd.f32 %v302, %v307
      %v315 = vadd.f32 %v303, %v307
      %v316 = vadd.f32 %v304, %v307
      %v317 = vmax.f32 %v309, 0.0
      %v318 = vmax.f32 %v310, 0.0
      %v319 = vmax.f32 %v311, 0.0
      %v320 = vmax.f32 %v312, 0.0
      %v321 = vmax.f32 %v313, 0.0
      %v322 = vmax.f32 %v314, 0.0
      %v323 = vmax.f32 %v315, 0.0
      %v324 = vmax.f32 %v316, 0.0
      %v325 = vld [vmem:[%s269] sm:$0xf]
      %v326 = vld [vmem:[%s269 + $0x4] sm:$0xf]
      %v327 = vld [vmem:[%s269 + $0x8] sm:$0xf]
      %v328 = vld [vmem:[%s269 + $0xc] sm:$0xf]
      %v329 = vld [vmem:[%s269 + $0x10] sm:$0xf]
      %v330 = vld [vmem:[%s269 + $0x14] sm:$0xf]
      %v331 = vld [vmem:[%s269 + $0x18] sm:$0xf]
      %v332 = vld [vmem:[%s269 + $0x1c] sm:$0xf]
      %v333 = vunpack.c.l.bf16 %v325
      %v334 = vunpack.c.l.bf16 %v326
      %v335 = vunpack.c.l.bf16 %v327
      %v336 = vunpack.c.l.bf16 %v328
      %v337 = vunpack.c.l.bf16 %v329
      %v338 = vunpack.c.l.bf16 %v330
      %v339 = vunpack.c.l.bf16 %v331
      %v340 = vunpack.c.l.bf16 %v332
      %v341 = vld [vmem:[%s4] sm:$0x1]
      %v343 = vperm.slane %v341, 0
      %v345 = vmul.f32 %v333, %v343
      %v346 = vmul.f32 %v334, %v343
      %v347 = vmul.f32 %v335, %v343
      %v348 = vmul.f32 %v336, %v343
      %v349 = vmul.f32 %v337, %v343
      %v350 = vmul.f32 %v338, %v343
      %v351 = vmul.f32 %v339, %v343
      %v352 = vmul.f32 %v340, %v343
      %v353 = vld [vmem:[%s5] sm:$0x1]
      %v355 = vperm.slane %v353, 0
      %v357 = vadd.f32 %v345, %v355
      %v358 = vadd.f32 %v346, %v355
      %v359 = vadd.f32 %v347, %v355
      %v360 = vadd.f32 %v348, %v355
      %v361 = vadd.f32 %v349, %v355
      %v362 = vadd.f32 %v350, %v355
      %v363 = vadd.f32 %v351, %v355
      %v364 = vadd.f32 %v352, %v355
      %v365 = vadd.f32 %v317, %v357
      %v366 = vadd.f32 %v318, %v358
      %v367 = vadd.f32 %v319, %v359
      %v368 = vadd.f32 %v320, %v360
      %v369 = vadd.f32 %v321, %v361
      %v370 = vadd.f32 %v322, %v362
      %v371 = vadd.f32 %v323, %v363
      %v372 = vadd.f32 %v324, %v364
      %v373 = vmax.f32 %v365, 0.0
      %v374 = vmax.f32 %v366, 0.0
      %v375 = vmax.f32 %v367, 0.0
      %v376 = vmax.f32 %v368, 0.0
      %v377 = vmax.f32 %v369, 0.0
      %v378 = vmax.f32 %v370, 0.0
      %v379 = vmax.f32 %v371, 0.0
      %v380 = vmax.f32 %v372, 0.0
      %v381 = vpack.c.bf16 %v373, %v373
      %v382 = vpack.c.bf16 %v374, %v374
      %v383 = vpack.c.bf16 %v375, %v375
      %v384 = vpack.c.bf16 %v376, %v376
      %v385 = vpack.c.bf16 %v377, %v377
      %v386 = vpack.c.bf16 %v378, %v378
      %v387 = vpack.c.bf16 %v379, %v379
      %v388 = vpack.c.bf16 %v380, %v380
      %389 = vst [vmem:[%s275] sm:$0xf] %v381
      %390 = vst [vmem:[%s275 + $0x4] sm:$0xf] %v382
      %391 = vst [vmem:[%s275 + $0x8] sm:$0xf] %v383
      %392 = vst [vmem:[%s275 + $0xc] sm:$0xf] %v384
      %393 = vst [vmem:[%s275 + $0x10] sm:$0xf] %v385
      %394 = vst [vmem:[%s275 + $0x14] sm:$0xf] %v386
      %395 = vst [vmem:[%s275 + $0x18] sm:$0xf] %v387
      %396 = vst [vmem:[%s275 + $0x1c] sm:$0xf] %v388
      %s397 = smul.u32 8, %s17
      %p398 = scmp.lt.s32.totalorder %s397, 15
      %s399 = scalar_select %p398, %s397, 15
      %s400 = smul.addr %s399, 4
      %s401 = scalar_lea.vmem %s6, %s400
      // Predicated region
      $region45: #{res_block_forward.9} parent=43 // pred_check
        %p402 = pneg %p171
      $region46: #{res_block_forward.9} parent=43 // pred_check_branch
        %404 = sbr.rel (%p402) target = $region48
      $region47: #{res_block_forward.9} parent=43 // pred_region
        %s405 = smul.u32 8, %s17
      $region48: #{res_block_forward.9} parent=43 // pred_fallthru
        _
    $region44: #{res_block_forward.9} parent=5 // pred_fallthru
      _
    %p406 = scmp.le.s32.totalorder 2, %s12
    // Predicated region
    $region49: #{res_block_forward.9} parent=5 // pred_check
      %p407 = pneg %p406
    $region50: #{res_block_forward.9} parent=5 // pred_check_branch
      %409 = sbr.rel (%p407) target = $region52
    $region51: #{res_block_forward.9} parent=5 // pred_region
      %s410 = ssub.s32 %s12, 2
      // Predicated region
      $region53: #{res_block_forward.9} parent=51 // pred_check
        %p411 = pneg %p177
      $region54: #{res_block_forward.9} parent=51 // pred_check_branch
        %413 = sbr.rel (%p411) target = $region56
      $region55: #{res_block_forward.9} parent=51 // pred_region
        %s414 = smul.u32 8, %s18
        %p415 = scmp.lt.s32.totalorder %s414, 15
        %s416 = scalar_select %p415, %s414, 15
        %s417 = smul.addr %s416, 4
        %s418 = scalar_lea.vmem %s6, %s417
      $region56: #{res_block_forward.9} parent=51 // pred_fallthru
        _
    $region52: #{res_block_forward.9} parent=5 // pred_fallthru
      _
  $region6: #{res_block_forward.9} parent=0 // loop_footer
    %s16 = sadd.s32 1, %s12
  $region7: #{res_block_forward.9} parent=0 // loop_footer_branch
    %11 = sbr.rel target = $region3
  $region8: #{res_block_forward.9} parent=0 // loop_exit
    _

</llo_original>
